<compile_context>
chip_gen: v5e
topology: v5e:2x2
jax: 0.10.0
libtpu: 0.0.40
codegen_flags: <defaults>
</compile_context>

<pallas_src>
import jax
import jax.numpy as jnp
from jax.experimental import pallas as pl
from jax.experimental.pallas import tpu as pltpu

HID = 128          # per-network hidden width
WIDE = 2 * HID     # fused lane width (network1 | network2)


def _rup8(n):
    return ((n + 7) // 8) * 8


def _relu(x):
    return jnp.maximum(x, 0.0)


def _dual_enc_dec_kernel(p_ref, obs_ref, xtar_ref, w_slab_ref, w_in_ref, b_ref,
                         out_ref):
    F = obs_ref.shape[1]          # 2*d_x + d_y1 + d_y2 + 1
    d_x = xtar_ref.shape[1]
    d_out = out_ref.shape[1]      # 2*d_y1 + 2*d_y2
    off_lat = _rup8(F)            # row offsets inside w_in (must match packing)
    off_x = off_lat + HID

    # ---------- fused encoders: lanes 0:128 = encoder1, lanes 128:256 = encoder2 ----------
    obs = obs_ref[...]                                                  # [N, F]
    h = _relu(jnp.dot(obs, w_in_ref[:F, :],
                      preferred_element_type=jnp.float32) + b_ref[0:1, :])
    h = _relu(jnp.dot(h, w_slab_ref[0],
                      preferred_element_type=jnp.float32) + b_ref[1:2, :])
    r = jnp.dot(h, w_slab_ref[1],
                preferred_element_type=jnp.float32) + b_ref[2:3, :]     # [N, 256]

    # torch.mean(dim=0) for both encoders at once
    a = jnp.mean(r, axis=0, keepdims=True)                              # [1, 256]

    # latent = a1 * p1 + a2 * (1 - p1)   (p1 precomputed scalar in SMEM)
    p1 = p_ref[0, 0]
    latent = a[:, :HID] * p1 + a[:, HID:] * (1.0 - p1)                  # [1, 128]

    # ---------- fused decoders: layer 1 == concat(latent, x_tar) @ W (weight split) ----------
    lat_proj = jnp.dot(latent, w_in_ref[off_lat:off_lat + HID, :],
                       preferred_element_type=jnp.float32)              # [1, 256]
    x_tar = xtar_ref[...]                                               # [M, d_x]
    w_x = w_in_ref[off_x:off_x + d_x, :]                                # [d_x, 256]
    if d_x == 1:
        # K=1 matmul == outer product -> VPU broadcast multiply, keep the MXU free
        x_proj = x_tar * w_x                                            # [M,1]*[1,256] -> [M,256]
    else:
        x_proj = jnp.dot(x_tar, w_x, preferred_element_type=jnp.float32)

    h = _relu(lat_proj + x_proj + b_ref[3:4, :])                        # [M, 256]
    h = _relu(jnp.dot(h, w_slab_ref[2],
                      preferred_element_type=jnp.float32) + b_ref[4:5, :])
    out = jnp.dot(h, w_slab_ref[3],
                  preferred_element_type=jnp.float32) + b_ref[5:6, :]   # [M, 256]
    # cat(output1, output2) lives in lanes 0:d_out of the fused result
    out_ref[...] = out[:, :d_out]


def init_params(key, d_x, d_y1, d_y2):
    """PyTorch-style (uniform +/- 1/sqrt(fan_in)) init, stored [in, out], then packed."""
    def linear(k, fan_in, fan_out):
        k1, k2 = jax.random.split(k)
        bound = float(fan_in) ** -0.5
        w = jax.random.uniform(k1, (fan_in, fan_out), jnp.float32, -bound, bound)
        b = jax.random.uniform(k2, (fan_out,), jnp.float32, -bound, bound)
        return w, b

    keys = jax.random.split(key, 12)
    din1 = d_x + d_y1 + 1
    din2 = d_x + d_y2 + 1

    enc1 = [linear(keys[0], din1, HID), linear(keys[1], HID, HID), linear(keys[2], HID, HID)]
    enc2 = [linear(keys[3], din2, HID), linear(keys[4], HID, HID), linear(keys[5], HID, HID)]
    dec1 = [linear(keys[6], HID + d_x, HID), linear(keys[7], HID, HID), linear(keys[8], HID, 2 * d_y1)]
    dec2 = [linear(keys[9], HID + d_x, HID), linear(keys[10], HID, HID), linear(keys[11], HID, 2 * d_y2)]

    F = 2 * d_x + d_y1 + d_y2 + 1
    d_out = 2 * d_y1 + 2 * d_y2

    # fused encoder layer-1 weight: maps raw obs columns to [enc1 | enc2] lanes
    e1w1, e2w1 = enc1[0][0], enc2[0][0]
    w_obs = jnp.zeros((F, WIDE), jnp.float32)
    w_obs = w_obs.at[0:d_x + d_y1, 0:HID].set(e1w1[0:d_x + d_y1])
    w_obs = w_obs.at[d_x + d_y1:F - 1, HID:WIDE].set(e2w1[0:d_x + d_y2])
    w_obs = w_obs.at[F - 1, 0:HID].set(e1w1[d_x + d_y1])       # context column -> enc1
    w_obs = w_obs.at[F - 1, HID:WIDE].set(e2w1[d_x + d_y2])    # context column -> enc2

    def blockdiag(wa, wb):
        z = jnp.zeros((WIDE, WIDE), jnp.float32)
        return z.at[:HID, :HID].set(wa).at[HID:, HID:].set(wb)

    # decoder layer 1: torch input is cat(latent[128], x_tar[d_x]) -> split the weight rows
    d1w1, d2w1 = dec1[0][0], dec2[0][0]
    w_lat = jnp.concatenate([d1w1[:HID], d2w1[:HID]], axis=1)   # [128, 256]
    w_x = jnp.concatenate([d1w1[HID:], d2w1[HID:]], axis=1)     # [d_x, 256]

    # decoder output layer, block layout so the fused hidden maps to cat(out1, out2)
    w_out = jnp.zeros((WIDE, WIDE), jnp.float32)
    w_out = w_out.at[:HID, 0:2 * d_y1].set(dec1[2][0])
    w_out = w_out.at[HID:, 2 * d_y1:d_out].set(dec2[2][0])

    w_slab = jnp.stack([
        blockdiag(enc1[1][0], enc2[1][0]),   # encoder layer 2 (block-diag)
        blockdiag(enc1[2][0], enc2[2][0]),   # encoder layer 3 (block-diag)
        blockdiag(dec1[1][0], dec2[1][0]),   # decoder layer 2 (block-diag)
        w_out,                               # decoder layer 3 (lane-padded)
    ])                                        # [4, 256, 256]

    off_lat = _rup8(F)
    off_x = off_lat + HID
    rows = off_x + _rup8(d_x)
    w_in = jnp.zeros((rows, WIDE), jnp.float32)
    w_in = w_in.at[0:F].set(w_obs)
    w_in = w_in.at[off_lat:off_lat + HID].set(w_lat)
    w_in = w_in.at[off_x:off_x + d_x].set(w_x)

    def bcat(b1, b2):
        b = jnp.concatenate([b1, b2])
        return jnp.zeros((WIDE,), jnp.float32).at[:b.shape[0]].set(b)

    b_slab = jnp.stack([
        bcat(enc1[0][1], enc2[0][1]),
        bcat(enc1[1][1], enc2[1][1]),
        bcat(enc1[2][1], enc2[2][1]),
        bcat(dec1[0][1], dec2[0][1]),
        bcat(dec1[1][1], dec2[1][1]),
        bcat(dec1[2][1], dec2[2][1]),
    ])                                        # [6, 256]

    return {"dims": (d_x, d_y1, d_y2),
            "w_slab": w_slab, "w_in": w_in, "b_slab": b_slab,
            "raw": (enc1, enc2, dec1, dec2)}


def dual_encoder_decoder(params, obs, x_tar, p=0, key=None):
    """Forward pass. `p` must be a static Python value (mirrors the torch `if p == 0`)."""
    d_x, d_y1, d_y2 = params["dims"]
    F = 2 * d_x + d_y1 + d_y2 + 1
    d_out = 2 * d_y1 + 2 * d_y2
    assert obs.shape[1] == F, (obs.shape, F)
    N, M = obs.shape[0], x_tar.shape[0]

    if p == 0:
        # torch.rand(1) x2, normalized -> deterministic here via a PRNG key
        u = jax.random.uniform(key, (2,), jnp.float32)
        p1 = (u[0] / (u[0] + u[1])).reshape(1, 1)
    else:
        p1 = jnp.ones((1, 1), jnp.float32)    # latent = a1

    w_slab, w_in, b_slab = params["w_slab"], params["w_in"], params["b_slab"]

    vmem = pl.BlockSpec(memory_space=pltpu.MemorySpace.VMEM)
    smem = pl.BlockSpec(memory_space=pltpu.MemorySpace.SMEM)

    flops = 2 * (N * F * WIDE + 2 * N * WIDE * WIDE          # fused encoders
                 + HID * WIDE + M * d_x * WIDE               # decoder layer 1
                 + 2 * M * WIDE * WIDE)                      # decoder layers 2-3
    bytes_accessed = 4 * (obs.size + x_tar.size + w_slab.size + w_in.size
                          + b_slab.size + M * d_out)

    out = pl.pallas_call(
        _dual_enc_dec_kernel,
        out_shape=jax.ShapeDtypeStruct((M, d_out), jnp.float32),
        in_specs=[smem, vmem, vmem, vmem, vmem, vmem],
        out_specs=vmem,
        cost_estimate=pl.CostEstimate(flops=int(flops), transcendentals=0,
                                      bytes_accessed=int(bytes_accessed)),
    )(p1, obs.astype(jnp.float32), x_tar.astype(jnp.float32), w_slab, w_in, b_slab)
    return out


def _ref_forward(raw, dims, obs, x_tar, p1):
    """Pure-JAX un-fused reference (mirrors the torch module) for correctness check."""
    d_x, d_y1, d_y2 = dims
    enc1, enc2, dec1, dec2 = raw

    def mlp(layers, x):
        for i, (w, b) in enumerate(layers):
            x = x @ w + b
            if i < len(layers) - 1:
                x = jnp.maximum(x, 0.0)
        return x

    obs1 = obs[:, :d_x + d_y1]
    obs2 = obs[:, d_x + d_y1:2 * d_x + d_y1 + d_y2]
    ctx = obs[:, -1:]
    r1 = mlp(enc1, jnp.concatenate([obs1, ctx], axis=-1))
    r2 = mlp(enc2, jnp.concatenate([obs2, ctx], axis=-1))
    a1 = jnp.mean(r1, axis=0, keepdims=True)
    a2 = jnp.mean(r2, axis=0, keepdims=True)
    latent = a1 * p1 + a2 * (1.0 - p1)
    latent = jnp.repeat(latent, x_tar.shape[0], axis=0)
    cc = jnp.concatenate([latent, x_tar], axis=-1)
    return jnp.concatenate([mlp(dec1, cc), mlp(dec2, cc)], axis=-1)


if __name__ == "__main__":
    d_x, d_y1, d_y2 = 1, 2, 2
    key = jax.random.PRNGKey(0)
    kp, ko, kx, kr = jax.random.split(key, 4)

    params = init_params(kp, d_x, d_y1, d_y2)

    N_obs, M = 8, 16
    # obs columns: [x(d_x), y1(d_y1), x(d_x), y2(d_y2), context(1)]
    obs = jax.random.normal(ko, (N_obs, 2 * d_x + d_y1 + d_y2 + 1), jnp.float32)
    x_tar = jax.random.normal(kx, (M, d_x), jnp.float32)

    out = dual_encoder_decoder(params, obs, x_tar, p=0, key=kr)
    out = jax.block_until_ready(out)
    assert out.shape == (M, 2 * d_y1 + 2 * d_y2), out.shape

    # correctness check against the un-fused pure-JAX reference (same p1 draw)
    u = jax.random.uniform(kr, (2,), jnp.float32)
    p1 = u[0] / (u[0] + u[1])
    ref = _ref_forward(params["raw"], params["dims"], obs, x_tar, p1)
    max_err = float(jnp.max(jnp.abs(out - ref)))
    assert jnp.allclose(out, ref, rtol=1e-2, atol=1e-2), max_err

    print("KERNEL_OK")
</pallas_src>

<mosaic_0001>
module attributes {stable_mosaic.version = 11 : i64} {
  func.func @_dual_enc_dec_kernel(%arg0: memref<1x1xf32, #tpu.memory_space<smem>>, %arg1: memref<8x7xf32, #tpu.memory_space<vmem>>, %arg2: memref<16x1xf32, #tpu.memory_space<vmem>>, %arg3: memref<4x256x256xf32, #tpu.memory_space<vmem>>, %arg4: memref<144x256xf32, #tpu.memory_space<vmem>>, %arg5: memref<6x256xf32, #tpu.memory_space<vmem>>, %arg6: memref<16x8xf32, #tpu.memory_space<vmem>>) attributes {dimension_semantics = [], scalar_prefetch = 0 : i64, scratch_operands = 0 : i64, tpu.core_type = #tpu.core_type<tc>} {
    %c0 = arith.constant 0 : index
    %c0_0 = arith.constant 0 : index
    %0 = vector.load %arg1[%c0, %c0_0] : memref<8x7xf32, #tpu.memory_space<vmem>>, vector<8x7xf32>
    %c0_1 = arith.constant 0 : index
    %c0_2 = arith.constant 0 : index
    %1 = vector.load %arg4[%c0_1, %c0_2] : memref<144x256xf32, #tpu.memory_space<vmem>>, vector<7x256xf32>
    %cst = arith.constant dense<0.000000e+00> : vector<8x256xf32>
    %2 = tpu.matmul %0, %1, %cst {dimension_numbers = #tpu.dot_dimension_numbers<[1], [0], [0], [1], [0, 0, 1, 1], [], []>} : vector<8x7xf32>, vector<7x256xf32>, vector<8x256xf32> -> vector<8x256xf32>
    %c0_3 = arith.constant 0 : index
    %c0_4 = arith.constant 0 : index
    %3 = vector.load %arg5[%c0_3, %c0_4] : memref<6x256xf32, #tpu.memory_space<vmem>>, vector<1x256xf32>
    %4 = vector.broadcast %3 : vector<1x256xf32> to vector<8x256xf32>
    %5 = arith.addf %2, %4 : vector<8x256xf32>
    %cst_5 = arith.constant 0.000000e+00 : f32
    %6 = vector.broadcast %cst_5 : f32 to vector<8x256xf32>
    %7 = arith.maximumf %5, %6 : vector<8x256xf32>
    %c0_6 = arith.constant 0 : index
    %c0_7 = arith.constant 0 : index
    %c0_8 = arith.constant 0 : index
    %8 = vector.load %arg3[%c0_6, %c0_7, %c0_8] : memref<4x256x256xf32, #tpu.memory_space<vmem>>, vector<1x256x256xf32>
    %9 = vector.shape_cast %8 : vector<1x256x256xf32> to vector<256x256xf32>
    %cst_9 = arith.constant dense<0.000000e+00> : vector<8x256xf32>
    %10 = tpu.matmul %7, %9, %cst_9 {dimension_numbers = #tpu.dot_dimension_numbers<[1], [0], [0], [1], [0, 0, 1, 1], [], []>} : vector<8x256xf32>, vector<256x256xf32>, vector<8x256xf32> -> vector<8x256xf32>
    %c1 = arith.constant 1 : index
    %c0_10 = arith.constant 0 : index
    %11 = vector.load %arg5[%c1, %c0_10] : memref<6x256xf32, #tpu.memory_space<vmem>>, vector<1x256xf32>
    %12 = vector.broadcast %11 : vector<1x256xf32> to vector<8x256xf32>
    %13 = arith.addf %10, %12 : vector<8x256xf32>
    %cst_11 = arith.constant 0.000000e+00 : f32
    %14 = vector.broadcast %cst_11 : f32 to vector<8x256xf32>
    %15 = arith.maximumf %13, %14 : vector<8x256xf32>
    %c1_12 = arith.constant 1 : index
    %c0_13 = arith.constant 0 : index
    %c0_14 = arith.constant 0 : index
    %16 = vector.load %arg3[%c1_12, %c0_13, %c0_14] : memref<4x256x256xf32, #tpu.memory_space<vmem>>, vector<1x256x256xf32>
    %17 = vector.shape_cast %16 : vector<1x256x256xf32> to vector<256x256xf32>
    %cst_15 = arith.constant dense<0.000000e+00> : vector<8x256xf32>
    %18 = tpu.matmul %15, %17, %cst_15 {dimension_numbers = #tpu.dot_dimension_numbers<[1], [0], [0], [1], [0, 0, 1, 1], [], []>} : vector<8x256xf32>, vector<256x256xf32>, vector<8x256xf32> -> vector<8x256xf32>
    %c2 = arith.constant 2 : index
    %c0_16 = arith.constant 0 : index
    %19 = vector.load %arg5[%c2, %c0_16] : memref<6x256xf32, #tpu.memory_space<vmem>>, vector<1x256xf32>
    %20 = vector.broadcast %19 : vector<1x256xf32> to vector<8x256xf32>
    %21 = arith.addf %18, %20 : vector<8x256xf32>
    %cst_17 = arith.constant dense<0.000000e+00> : vector<256xf32>
    %22 = vector.multi_reduction <add>, %21, %cst_17 [0] : vector<8x256xf32> to vector<256xf32>
    %23 = vector.shape_cast %22 : vector<256xf32> to vector<1x256xf32>
    %cst_18 = arith.constant 8.000000e+00 : f32
    %24 = vector.broadcast %cst_18 : f32 to vector<1x256xf32>
    %25 = arith.divf %23, %24 : vector<1x256xf32>
    %c0_19 = arith.constant 0 : index
    %c0_20 = arith.constant 0 : index
    %26 = memref.load %arg0[%c0_19, %c0_20] : memref<1x1xf32, #tpu.memory_space<smem>>
    %27 = vector.extract_strided_slice %25 {offsets = [0, 0], sizes = [1, 128], strides = [1, 1]} : vector<1x256xf32> to vector<1x128xf32>
    %28 = vector.broadcast %26 : f32 to vector<1x128xf32>
    %29 = arith.mulf %27, %28 : vector<1x128xf32>
    %30 = vector.extract_strided_slice %25 {offsets = [0, 128], sizes = [1, 128], strides = [1, 1]} : vector<1x256xf32> to vector<1x128xf32>
    %cst_21 = arith.constant 1.000000e+00 : f32
    %31 = arith.subf %cst_21, %26 : f32
    %32 = vector.broadcast %31 : f32 to vector<1x128xf32>
    %33 = arith.mulf %30, %32 : vector<1x128xf32>
    %34 = arith.addf %29, %33 : vector<1x128xf32>
    %c8 = arith.constant 8 : index
    %c0_22 = arith.constant 0 : index
    %35 = vector.load %arg4[%c8, %c0_22] : memref<144x256xf32, #tpu.memory_space<vmem>>, vector<128x256xf32>
    %cst_23 = arith.constant dense<0.000000e+00> : vector<1x256xf32>
    %36 = tpu.matmul %34, %35, %cst_23 {dimension_numbers = #tpu.dot_dimension_numbers<[1], [0], [0], [1], [0, 0, 1, 1], [], []>} : vector<1x128xf32>, vector<128x256xf32>, vector<1x256xf32> -> vector<1x256xf32>
    %c0_24 = arith.constant 0 : index
    %c0_25 = arith.constant 0 : index
    %37 = vector.load %arg2[%c0_24, %c0_25] : memref<16x1xf32, #tpu.memory_space<vmem>>, vector<16x1xf32>
    %c136 = arith.constant 136 : index
    %c0_26 = arith.constant 0 : index
    %38 = vector.load %arg4[%c136, %c0_26] : memref<144x256xf32, #tpu.memory_space<vmem>>, vector<1x256xf32>
    %39 = vector.broadcast %37 : vector<16x1xf32> to vector<16x256xf32>
    %40 = vector.broadcast %38 : vector<1x256xf32> to vector<16x256xf32>
    %41 = arith.mulf %39, %40 : vector<16x256xf32>
    %42 = vector.broadcast %36 : vector<1x256xf32> to vector<16x256xf32>
    %43 = arith.addf %42, %41 : vector<16x256xf32>
    %c3 = arith.constant 3 : index
    %c0_27 = arith.constant 0 : index
    %44 = vector.load %arg5[%c3, %c0_27] : memref<6x256xf32, #tpu.memory_space<vmem>>, vector<1x256xf32>
    %45 = vector.broadcast %44 : vector<1x256xf32> to vector<16x256xf32>
    %46 = arith.addf %43, %45 : vector<16x256xf32>
    %cst_28 = arith.constant 0.000000e+00 : f32
    %47 = vector.broadcast %cst_28 : f32 to vector<16x256xf32>
    %48 = arith.maximumf %46, %47 : vector<16x256xf32>
    %c2_29 = arith.constant 2 : index
    %c0_30 = arith.constant 0 : index
    %c0_31 = arith.constant 0 : index
    %49 = vector.load %arg3[%c2_29, %c0_30, %c0_31] : memref<4x256x256xf32, #tpu.memory_space<vmem>>, vector<1x256x256xf32>
    %50 = vector.shape_cast %49 : vector<1x256x256xf32> to vector<256x256xf32>
    %cst_32 = arith.constant dense<0.000000e+00> : vector<16x256xf32>
    %51 = tpu.matmul %48, %50, %cst_32 {dimension_numbers = #tpu.dot_dimension_numbers<[1], [0], [0], [1], [0, 0, 1, 1], [], []>} : vector<16x256xf32>, vector<256x256xf32>, vector<16x256xf32> -> vector<16x256xf32>
    %c4 = arith.constant 4 : index
    %c0_33 = arith.constant 0 : index
    %52 = vector.load %arg5[%c4, %c0_33] : memref<6x256xf32, #tpu.memory_space<vmem>>, vector<1x256xf32>
    %53 = vector.broadcast %52 : vector<1x256xf32> to vector<16x256xf32>
    %54 = arith.addf %51, %53 : vector<16x256xf32>
    %cst_34 = arith.constant 0.000000e+00 : f32
    %55 = vector.broadcast %cst_34 : f32 to vector<16x256xf32>
    %56 = arith.maximumf %54, %55 : vector<16x256xf32>
    %c3_35 = arith.constant 3 : index
    %c0_36 = arith.constant 0 : index
    %c0_37 = arith.constant 0 : index
    %57 = vector.load %arg3[%c3_35, %c0_36, %c0_37] : memref<4x256x256xf32, #tpu.memory_space<vmem>>, vector<1x256x256xf32>
    %58 = vector.shape_cast %57 : vector<1x256x256xf32> to vector<256x256xf32>
    %cst_38 = arith.constant dense<0.000000e+00> : vector<16x256xf32>
    %59 = tpu.matmul %56, %58, %cst_38 {dimension_numbers = #tpu.dot_dimension_numbers<[1], [0], [0], [1], [0, 0, 1, 1], [], []>} : vector<16x256xf32>, vector<256x256xf32>, vector<16x256xf32> -> vector<16x256xf32>
    %c5 = arith.constant 5 : index
    %c0_39 = arith.constant 0 : index
    %60 = vector.load %arg5[%c5, %c0_39] : memref<6x256xf32, #tpu.memory_space<vmem>>, vector<1x256xf32>
    %61 = vector.broadcast %60 : vector<1x256xf32> to vector<16x256xf32>
    %62 = arith.addf %59, %61 : vector<16x256xf32>
    %63 = vector.extract_strided_slice %62 {offsets = [0, 0], sizes = [16, 8], strides = [1, 1]} : vector<16x256xf32> to vector<16x8xf32>
    %c0_40 = arith.constant 0 : index
    %c0_41 = arith.constant 0 : index
    %64 = vector.load %arg6[%c0_40, %c0_41] : memref<16x8xf32, #tpu.memory_space<vmem>>, vector<16x8xf32>
    tpu.vector_store %arg6[%c0_40, %c0_41], %63 {strides = array<i32>} : memref<16x8xf32, #tpu.memory_space<vmem>>, vector<16x8xf32>,
    return
  }
}

</mosaic_0001>

<llo_original>
// kernel: tpu_custom_call.1
$region0: #{tpu_custom_call.1}
  #allocation0 [shape = 'u32[]', space=smem, size = 0x4, offset = 0x4, fixed_abs, tag = 'smem constant byte address 0x4 - core index']
  #allocation1 [shape = 'u32[72,128]{1,0:T(1,128)}', space=vmem, size = 0x9000, scoped, tag = 'internal scratch']
  #allocation2 [shape = 'f32[1,1]{1,0:T(1,128)S(6)}', space=smem, size = 0x200, scoped, tag = 'scoped memory for tpu_custom_call.1']
  %s0 = inlined_call_operand.<no memory space> [shape: f32[1,1], index: 0, kind: input, shape index: {}]
  %s1 = inlined_call_operand.hbm [shape: f32[8,7], index: 1, kind: input, shape index: {}]
  %s2 = inlined_call_operand.vmem [shape: f32[16,1], index: 2, kind: input, shape index: {}]
  %s3 = inlined_call_operand.hbm [shape: f32[4,256,256], index: 3, kind: input, shape index: {}]
  %s4 = inlined_call_operand.hbm [shape: f32[144,256], index: 4, kind: input, shape index: {}]
  %s5 = inlined_call_operand.vmem [shape: f32[6,256], index: 5, kind: input, shape index: {}]
  %s6 = inlined_call_operand.vmem [shape: f32[16,8], index: 6, kind: output, shape index: {}]
  %s7 = sld [smem:[#allocation0]]
  $region46: #{tpu_custom_call.1} parent=0
    _
  %s9 = ssub.s32 1, %s7
  %s10 = scalar_select 0, %s9, %s7
  %11 = sst [smem:[#allocation2]] %s0
  $region1: #{tpu_custom_call.1} parent=0
    #allocation3 [shape = 'u8[4096]{0}', space=vmem, size = 0x1000, scoped, tag = 'input window, operand 1, single buffered']
    #allocation4 [shape = 's32[1]{0}', space=sflag, size = 0x4, scoped, tag = 'scoped memory for tpu_custom_call.1']
    #allocation5 [shape = 'u8[1048576]{0}', space=vmem, size = 0x100000, scoped, tag = 'input window, operand 3, single buffered']
    #allocation6 [shape = 's32[1]{0}', space=sflag, size = 0x4, scoped, tag = 'scoped memory for tpu_custom_call.1']
    #allocation7 [shape = 'u8[147456]{0}', space=vmem, size = 0x24000, scoped, tag = 'input window, operand 4, single buffered']
    %12 = vsyncpa [#allocation4], 0
    %13 = vsyncpa [#allocation6], 0
    // Predicated region
    $region2: #{tpu_custom_call.1} parent=1 // pred_check
      _
    $region3: #{tpu_custom_call.1} parent=1 // pred_check_branch
      %15 = sbr.rel (0) target = $region5
    $region4: #{tpu_custom_call.1} parent=1 // pred_region
      _
    $region5: #{tpu_custom_call.1} parent=1 // pred_fallthru
      _
    // Predicated region
    $region6: #{tpu_custom_call.1} parent=1 // pred_check
      _
    $region7: #{tpu_custom_call.1} parent=1 // pred_check_branch
      %17 = sbr.rel (0) target = $region9
    $region8: #{tpu_custom_call.1} parent=1 // pred_region
      %19 = vsyncadd [#allocation4], 0
      %s21 = sshll.u32 %s1, 4
      %s22 = int_to_ptr.hbm [resolvable:$true] %s21
      %s23 = sshll.u32 [#allocation3], 4
      %s24 = int_to_ptr.vmem [resolvable:$true] %s23
      %26 = dma.hbm_to_vmem [thread:$0]  %s22, 128, %s24, [#allocation4]
    $region9: #{tpu_custom_call.1} parent=1 // pred_fallthru
      _
    // Predicated region
    $region10: #{tpu_custom_call.1} parent=1 // pred_check
      _
    $region11: #{tpu_custom_call.1} parent=1 // pred_check_branch
      %28 = sbr.rel (0) target = $region13
    $region12: #{tpu_custom_call.1} parent=1 // pred_region
      _
    $region13: #{tpu_custom_call.1} parent=1 // pred_fallthru
      _
    // Predicated region
    $region14: #{tpu_custom_call.1} parent=1 // pred_check
      _
    $region15: #{tpu_custom_call.1} parent=1 // pred_check_branch
      %30 = sbr.rel (0) target = $region17
    $region16: #{tpu_custom_call.1} parent=1 // pred_region
      %32 = vsyncadd [#allocation6], 0
      %s33 = sshll.u32 %s3, 4
      %s34 = int_to_ptr.hbm [resolvable:$true] %s33
      %s35 = sshll.u32 [#allocation5], 4
      %s36 = int_to_ptr.vmem [resolvable:$true] %s35
      %41 = dma.hbm_to_vmem [thread:$0]  %s34, 32768, %s36, [#allocation6], 256, 256, 16
    $region17: #{tpu_custom_call.1} parent=1 // pred_fallthru
      _
    // Predicated region
    $region18: #{tpu_custom_call.1} parent=1 // pred_check
      _
    $region19: #{tpu_custom_call.1} parent=1 // pred_check_branch
      %43 = sbr.rel (0) target = $region21
    $region20: #{tpu_custom_call.1} parent=1 // pred_region
      %45 = vsyncadd [#allocation6], 0
      %s46 = sshll.u32 %s4, 4
      %s47 = int_to_ptr.hbm [resolvable:$true] %s46
      %s48 = sshll.u32 [#allocation7], 4
      %s49 = int_to_ptr.vmem [resolvable:$true] %s48
      %54 = dma.hbm_to_vmem [thread:$0]  %s47, 4608, %s49, [#allocation6], 256, 256, 16
    $region21: #{tpu_custom_call.1} parent=1 // pred_fallthru
      _
    // Predicated region
    $region22: #{tpu_custom_call.1} parent=1 // pred_check
      _
    $region23: #{tpu_custom_call.1} parent=1 // pred_check_branch
      %56 = sbr.rel (0) target = $region25
    $region24: #{tpu_custom_call.1} parent=1 // pred_region
      _
    $region25: #{tpu_custom_call.1} parent=1 // pred_fallthru
      _
    // Predicated region
    $region26: #{tpu_custom_call.1} parent=1 // pred_check
      _
    $region27: #{tpu_custom_call.1} parent=1 // pred_check_branch
      %58 = sbr.rel (0) target = $region29
    $region28: #{tpu_custom_call.1} parent=1 // pred_region
      %60 = dma.done [#allocation4], 128
    $region29: #{tpu_custom_call.1} parent=1 // pred_fallthru
      _
    // Predicated region
    $region30: #{tpu_custom_call.1} parent=1 // pred_check
      _
    $region31: #{tpu_custom_call.1} parent=1 // pred_check_branch
      %62 = sbr.rel (0) target = $region33
    $region32: #{tpu_custom_call.1} parent=1 // pred_region
      %64 = dma.done [#allocation6], 32768
    $region33: #{tpu_custom_call.1} parent=1 // pred_fallthru
      _
    // Predicated region
    $region34: #{tpu_custom_call.1} parent=1 // pred_check
      _
    $region35: #{tpu_custom_call.1} parent=1 // pred_check_branch
      %66 = sbr.rel (0) target = $region37
    $region36: #{tpu_custom_call.1} parent=1 // pred_region
      %68 = dma.done [#allocation6], 4608
    $region37: #{tpu_custom_call.1} parent=1 // pred_fallthru
      _
    %v69 = vld [vmem:[#allocation3] sm:$0xff]
    %v70 = vld [vmem:[#allocation7] sm:$0x7f]
    %v71 = vld [vmem:[#allocation7 + $0x8] sm:$0x7f]
    %v72 = vld [vmem:[%s5] ss:$8 sm:$0x3]
    %v74 = vperm.slane %v72, 0
    %v75 = vperm.slane %v72, 1
    %vm78 = vcmask 56320
    %v80 = vsel %vm78, %v69, 0
    %vm82 = vcmask 1046528
    %v84 = vsel %vm82, %v70, 0
    %v87 = vsel %vm82, %v71, 0
    %89 = vmatpush.msra.mxu0 0.0
    %90 = vmatpush.msra.mxu0 0.0
    %91 = vmatpush.msra.mxu0 0.0
    %92 = vmatpush.msra.mxu0 0.0
    %93 = vmatpush.msra.mxu0 0.0
    %94 = vmatpush.msra.mxu0 0.0
    %95 = vmatpush.msra.mxu0 0.0
    %96 = vmatpush.msra.mxu0 0.0
    %97 = vmatpush.msra.mxu0 0.0
    %98 = vmatpush.msra.mxu0 0.0
    %99 = vmatpush.msra.mxu0 0.0
    %100 = vmatpush.msra.mxu0 0.0
    %101 = vmatpush.msra.mxu0 0.0
    %102 = vmatpush.msra.mxu0 0.0
    %103 = vmatpush.msra.mxu0 0.0
    %104 = vmatpush.msra.mxu0 %v84
    %105 = vmatmul.f32.gmra.mxu0 %v80
    %v106 = vpop.f32.mrf.mxu0
    %v107 = vadd.f32 %v74, %v106
    %108 = vdwg.mxu0
    %109 = vmatpush.msra.mxu0 0.0
    %110 = vmatpush.msra.mxu0 0.0
    %111 = vmatpush.msra.mxu0 0.0
    %112 = vmatpush.msra.mxu0 0.0
    %113 = vmatpush.msra.mxu0 0.0
    %114 = vmatpush.msra.mxu0 0.0
    %115 = vmatpush.msra.mxu0 0.0
    %116 = vmatpush.msra.mxu0 0.0
    %117 = vmatpush.msra.mxu0 0.0
    %118 = vmatpush.msra.mxu0 0.0
    %119 = vmatpush.msra.mxu0 0.0
    %120 = vmatpush.msra.mxu0 0.0
    %121 = vmatpush.msra.mxu0 0.0
    %122 = vmatpush.msra.mxu0 0.0
    %123 = vmatpush.msra.mxu0 0.0
    %124 = vmatpush.msra.mxu0 %v87
    %125 = vmatmul.f32.gmra.mxu0 %v80
    %v126 = vpop.f32.mrf.mxu0
    %v127 = vadd.f32 %v75, %v126
    %128 = vdwg.mxu0
    %v129 = vmax.f32 %v107, 0.0
    %v130 = vmax.f32 %v127, 0.0
    %v131 = vld [vmem:[#allocation5] sm:$0xff]
    %v132 = vld [vmem:[#allocation5 + $0x8] sm:$0xff]
    %v133 = vld [vmem:[#allocation5 + $0x10] sm:$0xff]
    %v134 = vld [vmem:[#allocation5 + $0x18] sm:$0xff]
    %v135 = vld [vmem:[#allocation5 + $0x20] sm:$0xff]
    %v136 = vld [vmem:[#allocation5 + $0x28] sm:$0xff]
    %v137 = vld [vmem:[#allocation5 + $0x30] sm:$0xff]
    %v138 = vld [vmem:[#allocation5 + $0x38] sm:$0xff]
    %v139 = vld [vmem:[#allocation5 + $0x40] sm:$0xff]
    %v140 = vld [vmem:[#allocation5 + $0x48] sm:$0xff]
    %v141 = vld [vmem:[#allocation5 + $0x50] sm:$0xff]
    %v142 = vld [vmem:[#allocation5 + $0x58] sm:$0xff]
    %v143 = vld [vmem:[#allocation5 + $0x60] sm:$0xff]
    %v144 = vld [vmem:[#allocation5 + $0x68] sm:$0xff]
    %v145 = vld [vmem:[#allocation5 + $0x70] sm:$0xff]
    %v146 = vld [vmem:[#allocation5 + $0x78] sm:$0xff]
    %v147 = vld [vmem:[#allocation5 + $0x80] sm:$0xff]
    %v148 = vld [vmem:[#allocation5 + $0x88] sm:$0xff]
    %v149 = vld [vmem:[#allocation5 + $0x90] sm:$0xff]
    %v150 = vld [vmem:[#allocation5 + $0x98] sm:$0xff]
    %v151 = vld [vmem:[#allocation5 + $0xa0] sm:$0xff]
    %v152 = vld [vmem:[#allocation5 + $0xa8] sm:$0xff]
    %v153 = vld [vmem:[#allocation5 + $0xb0] sm:$0xff]
    %v154 = vld [vmem:[#allocation5 + $0xb8] sm:$0xff]
    %v155 = vld [vmem:[#allocation5 + $0xc0] sm:$0xff]
    %v156 = vld [vmem:[#allocation5 + $0xc8] sm:$0xff]
    %v157 = vld [vmem:[#allocation5 + $0xd0] sm:$0xff]
    %v158 = vld [vmem:[#allocation5 + $0xd8] sm:$0xff]
    %v159 = vld [vmem:[#allocation5 + $0xe0] sm:$0xff]
    %v160 = vld [vmem:[#allocation5 + $0xe8] sm:$0xff]
    %v161 = vld [vmem:[#allocation5 + $0xf0] sm:$0xff]
    %v162 = vld [vmem:[#allocation5 + $0xf8] sm:$0xff]
    %v163 = vld [vmem:[#allocation5 + $0x100] sm:$0xff]
    %v164 = vld [vmem:[#allocation5 + $0x108] sm:$0xff]
    %v165 = vld [vmem:[#allocation5 + $0x110] sm:$0xff]
    %v166 = vld [vmem:[#allocation5 + $0x118] sm:$0xff]
    %v167 = vld [vmem:[#allocation5 + $0x120] sm:$0xff]
    %v168 = vld [vmem:[#allocation5 + $0x128] sm:$0xff]
    %v169 = vld [vmem:[#allocation5 + $0x130] sm:$0xff]
    %v170 = vld [vmem:[#allocation5 + $0x138] sm:$0xff]
    %v171 = vld [vmem:[#allocation5 + $0x140] sm:$0xff]
    %v172 = vld [vmem:[#allocation5 + $0x148] sm:$0xff]
    %v173 = vld [vmem:[#allocation5 + $0x150] sm:$0xff]
    %v174 = vld [vmem:[#allocation5 + $0x158] sm:$0xff]
    %v175 = vld [vmem:[#allocation5 + $0x160] sm:$0xff]
    %v176 = vld [vmem:[#allocation5 + $0x168] sm:$0xff]
    %v177 = vld [vmem:[#allocation5 + $0x170] sm:$0xff]
    %v178 = vld [vmem:[#allocation5 + $0x178] sm:$0xff]
    %v179 = vld [vmem:[#allocation5 + $0x180] sm:$0xff]
    %v180 = vld [vmem:[#allocation5 + $0x188] sm:$0xff]
    %v181 = vld [vmem:[#allocation5 + $0x190] sm:$0xff]
    %v182 = vld [vmem:[#allocation5 + $0x198] sm:$0xff]
    %v183 = vld [vmem:[#allocation5 + $0x1a0] sm:$0xff]
    %v184 = vld [vmem:[#allocation5 + $0x1a8] sm:$0xff]
    %v185 = vld [vmem:[#allocation5 + $0x1b0] sm:$0xff]
    %v186 = vld [vmem:[#allocation5 + $0x1b8] sm:$0xff]
    %v187 = vld [vmem:[#allocation5 + $0x1c0] sm:$0xff]
    %v188 = vld [vmem:[#allocation5 + $0x1c8] sm:$0xff]
    %v189 = vld [vmem:[#allocation5 + $0x1d0] sm:$0xff]
    %v190 = vld [vmem:[#allocation5 + $0x1d8] sm:$0xff]
    %v191 = vld [vmem:[#allocation5 + $0x1e0] sm:$0xff]
    %v192 = vld [vmem:[#allocation5 + $0x1e8] sm:$0xff]
    %v193 = vld [vmem:[#allocation5 + $0x1f0] sm:$0xff]
    %v194 = vld [vmem:[#allocation5 + $0x1f8] sm:$0xff]
    %s195 = scalar_lea.vmem %s5, 1
    %v196 = vld [vmem:[%s195] ss:$8 sm:$0x3]
    %v198 = vperm.slane %v196, 0
    %v199 = vperm.slane %v196, 1
    %202 = vmatpush.msra.mxu0 %v161
    %203 = vmatpush.msra.mxu0 %v159
    %204 = vmatpush.msra.mxu0 %v157
    %205 = vmatpush.msra.mxu0 %v155
    %206 = vmatpush.msra.mxu0 %v153
    %207 = vmatpush.msra.mxu0 %v151
    %208 = vmatpush.msra.mxu0 %v149
    %209 = vmatpush.msra.mxu0 %v147
    %210 = vmatpush.msra.mxu0 %v145
    %211 = vmatpush.msra.mxu0 %v143
    %212 = vmatpush.msra.mxu0 %v141
    %213 = vmatpush.msra.mxu0 %v139
    %214 = vmatpush.msra.mxu0 %v137
    %215 = vmatpush.msra.mxu0 %v135
    %216 = vmatpush.msra.mxu0 %v133
    %217 = vmatpush.msra.mxu0 %v131
    %218 = vmatmul.f32.gmra.mxu0 %v129
    %v219 = vpop.f32.mrf.mxu0
    %v220 = vadd.f32 %v198, %v219
    %221 = vdwg.mxu0
    %222 = vmatpush.msra.mxu0 %v193
    %223 = vmatpush.msra.mxu0 %v191
    %224 = vmatpush.msra.mxu0 %v189
    %225 = vmatpush.msra.mxu0 %v187
    %226 = vmatpush.msra.mxu0 %v185
    %227 = vmatpush.msra.mxu0 %v183
    %228 = vmatpush.msra.mxu0 %v181
    %229 = vmatpush.msra.mxu0 %v179
    %230 = vmatpush.msra.mxu0 %v177
    %231 = vmatpush.msra.mxu0 %v175
    %232 = vmatpush.msra.mxu0 %v173
    %233 = vmatpush.msra.mxu0 %v171
    %234 = vmatpush.msra.mxu0 %v169
    %235 = vmatpush.msra.mxu0 %v167
    %236 = vmatpush.msra.mxu0 %v165
    %237 = vmatpush.msra.mxu0 %v163
    %238 = vmatmul.f32.gmra.mxu0 %v130
    %v239 = vpop.f32.mrf.mxu0
    %v240 = vadd.f32 %v220, %v239
    %241 = vdwg.mxu0
    %242 = vmatpush.msra.mxu0 %v162
    %243 = vmatpush.msra.mxu0 %v160
    %244 = vmatpush.msra.mxu0 %v158
    %245 = vmatpush.msra.mxu0 %v156
    %246 = vmatpush.msra.mxu0 %v154
    %247 = vmatpush.msra.mxu0 %v152
    %248 = vmatpush.msra.mxu0 %v150
    %249 = vmatpush.msra.mxu0 %v148
    %250 = vmatpush.msra.mxu0 %v146
    %251 = vmatpush.msra.mxu0 %v144
    %252 = vmatpush.msra.mxu0 %v142
    %253 = vmatpush.msra.mxu0 %v140
    %254 = vmatpush.msra.mxu0 %v138
    %255 = vmatpush.msra.mxu0 %v136
    %256 = vmatpush.msra.mxu0 %v134
    %257 = vmatpush.msra.mxu0 %v132
    %258 = vmatmul.f32.gmra.mxu0 %v129
    %v259 = vpop.f32.mrf.mxu0
    %v260 = vadd.f32 %v199, %v259
    %261 = vdwg.mxu0
    %262 = vmatpush.msra.mxu0 %v194
    %263 = vmatpush.msra.mxu0 %v192
    %264 = vmatpush.msra.mxu0 %v190
    %265 = vmatpush.msra.mxu0 %v188
    %266 = vmatpush.msra.mxu0 %v186
    %267 = vmatpush.msra.mxu0 %v184
    %268 = vmatpush.msra.mxu0 %v182
    %269 = vmatpush.msra.mxu0 %v180
    %270 = vmatpush.msra.mxu0 %v178
    %271 = vmatpush.msra.mxu0 %v176
    %272 = vmatpush.msra.mxu0 %v174
    %273 = vmatpush.msra.mxu0 %v172
    %274 = vmatpush.msra.mxu0 %v170
    %275 = vmatpush.msra.mxu0 %v168
    %276 = vmatpush.msra.mxu0 %v166
    %277 = vmatpush.msra.mxu0 %v164
    %278 = vmatmul.f32.gmra.mxu0 %v130
    %v279 = vpop.f32.mrf.mxu0
    %v280 = vadd.f32 %v260, %v279
    %281 = vdwg.mxu0
    %v282 = vmax.f32 %v240, 0.0
    %v283 = vmax.f32 %v280, 0.0
    %s284 = scalar_lea.vmem [#allocation5], 512
    %v285 = vld [vmem:[%s284] sm:$0xff]
    %v286 = vld [vmem:[%s284 + $0x8] sm:$0xff]
    %v287 = vld [vmem:[%s284 + $0x10] sm:$0xff]
    %v288 = vld [vmem:[%s284 + $0x18] sm:$0xff]
    %v289 = vld [vmem:[%s284 + $0x20] sm:$0xff]
    %v290 = vld [vmem:[%s284 + $0x28] sm:$0xff]
    %v291 = vld [vmem:[%s284 + $0x30] sm:$0xff]
    %v292 = vld [vmem:[%s284 + $0x38] sm:$0xff]
    %v293 = vld [vmem:[%s284 + $0x40] sm:$0xff]
    %v294 = vld [vmem:[%s284 + $0x48] sm:$0xff]
    %v295 = vld [vmem:[%s284 + $0x50] sm:$0xff]
    %v296 = vld [vmem:[%s284 + $0x58] sm:$0xff]
    %v297 = vld [vmem:[%s284 + $0x60] sm:$0xff]
    %v298 = vld [vmem:[%s284 + $0x68] sm:$0xff]
    %v299 = vld [vmem:[%s284 + $0x70] sm:$0xff]
    %v300 = vld [vmem:[%s284 + $0x78] sm:$0xff]
    %v301 = vld [vmem:[%s284 + $0x80] sm:$0xff]
    %v302 = vld [vmem:[%s284 + $0x88] sm:$0xff]
    %v303 = vld [vmem:[%s284 + $0x90] sm:$0xff]
    %v304 = vld [vmem:[%s284 + $0x98] sm:$0xff]
    %v305 = vld [vmem:[%s284 + $0xa0] sm:$0xff]
    %v306 = vld [vmem:[%s284 + $0xa8] sm:$0xff]
    %v307 = vld [vmem:[%s284 + $0xb0] sm:$0xff]
    %v308 = vld [vmem:[%s284 + $0xb8] sm:$0xff]
    %v309 = vld [vmem:[%s284 + $0xc0] sm:$0xff]
    %v310 = vld [vmem:[%s284 + $0xc8] sm:$0xff]
    %v311 = vld [vmem:[%s284 + $0xd0] sm:$0xff]
    %v312 = vld [vmem:[%s284 + $0xd8] sm:$0xff]
    %v313 = vld [vmem:[%s284 + $0xe0] sm:$0xff]
    %v314 = vld [vmem:[%s284 + $0xe8] sm:$0xff]
    %v315 = vld [vmem:[%s284 + $0xf0] sm:$0xff]
    %v316 = vld [vmem:[%s284 + $0xf8] sm:$0xff]
    %v317 = vld [vmem:[%s284 + $0x100] sm:$0xff]
    %v318 = vld [vmem:[%s284 + $0x108] sm:$0xff]
    %v319 = vld [vmem:[%s284 + $0x110] sm:$0xff]
    %v320 = vld [vmem:[%s284 + $0x118] sm:$0xff]
    %v321 = vld [vmem:[%s284 + $0x120] sm:$0xff]
    %v322 = vld [vmem:[%s284 + $0x128] sm:$0xff]
    %v323 = vld [vmem:[%s284 + $0x130] sm:$0xff]
    %v324 = vld [vmem:[%s284 + $0x138] sm:$0xff]
    %v325 = vld [vmem:[%s284 + $0x140] sm:$0xff]
    %v326 = vld [vmem:[%s284 + $0x148] sm:$0xff]
    %v327 = vld [vmem:[%s284 + $0x150] sm:$0xff]
    %v328 = vld [vmem:[%s284 + $0x158] sm:$0xff]
    %v329 = vld [vmem:[%s284 + $0x160] sm:$0xff]
    %v330 = vld [vmem:[%s284 + $0x168] sm:$0xff]
    %v331 = vld [vmem:[%s284 + $0x170] sm:$0xff]
    %v332 = vld [vmem:[%s284 + $0x178] sm:$0xff]
    %v333 = vld [vmem:[%s284 + $0x180] sm:$0xff]
    %v334 = vld [vmem:[%s284 + $0x188] sm:$0xff]
    %v335 = vld [vmem:[%s284 + $0x190] sm:$0xff]
    %v336 = vld [vmem:[%s284 + $0x198] sm:$0xff]
    %v337 = vld [vmem:[%s284 + $0x1a0] sm:$0xff]
    %v338 = vld [vmem:[%s284 + $0x1a8] sm:$0xff]
    %v339 = vld [vmem:[%s284 + $0x1b0] sm:$0xff]
    %v340 = vld [vmem:[%s284 + $0x1b8] sm:$0xff]
    %v341 = vld [vmem:[%s284 + $0x1c0] sm:$0xff]
    %v342 = vld [vmem:[%s284 + $0x1c8] sm:$0xff]
    %v343 = vld [vmem:[%s284 + $0x1d0] sm:$0xff]
    %v344 = vld [vmem:[%s284 + $0x1d8] sm:$0xff]
    %v345 = vld [vmem:[%s284 + $0x1e0] sm:$0xff]
    %v346 = vld [vmem:[%s284 + $0x1e8] sm:$0xff]
    %v347 = vld [vmem:[%s284 + $0x1f0] sm:$0xff]
    %v348 = vld [vmem:[%s284 + $0x1f8] sm:$0xff]
    %s349 = scalar_lea.vmem %s5, 2
    %v350 = vld [vmem:[%s349] ss:$8 sm:$0x3]
    %v352 = vperm.slane %v350, 0
    %v353 = vperm.slane %v350, 1
    %356 = vmatpush.msra.mxu0 %v315
    %357 = vmatpush.msra.mxu0 %v313
    %358 = vmatpush.msra.mxu0 %v311
    %359 = vmatpush.msra.mxu0 %v309
    %360 = vmatpush.msra.mxu0 %v307
    %361 = vmatpush.msra.mxu0 %v305
    %362 = vmatpush.msra.mxu0 %v303
    %363 = vmatpush.msra.mxu0 %v301
    %364 = vmatpush.msra.mxu0 %v299
    %365 = vmatpush.msra.mxu0 %v297
    %366 = vmatpush.msra.mxu0 %v295
    %367 = vmatpush.msra.mxu0 %v293
    %368 = vmatpush.msra.mxu0 %v291
    %369 = vmatpush.msra.mxu0 %v289
    %370 = vmatpush.msra.mxu0 %v287
    %371 = vmatpush.msra.mxu0 %v285
    %372 = vmatmul.f32.gmra.mxu0 %v282
    %v373 = vpop.f32.mrf.mxu0
    %v374 = vadd.f32 %v352, %v373
    %375 = vdwg.mxu0
    %376 = vmatpush.msra.mxu0 %v347
    %377 = vmatpush.msra.mxu0 %v345
    %378 = vmatpush.msra.mxu0 %v343
    %379 = vmatpush.msra.mxu0 %v341
    %380 = vmatpush.msra.mxu0 %v339
    %381 = vmatpush.msra.mxu0 %v337
    %382 = vmatpush.msra.mxu0 %v335
    %383 = vmatpush.msra.mxu0 %v333
    %384 = vmatpush.msra.mxu0 %v331
    %385 = vmatpush.msra.mxu0 %v329
    %386 = vmatpush.msra.mxu0 %v327
    %387 = vmatpush.msra.mxu0 %v325
    %388 = vmatpush.msra.mxu0 %v323
    %389 = vmatpush.msra.mxu0 %v321
    %390 = vmatpush.msra.mxu0 %v319
    %391 = vmatpush.msra.mxu0 %v317
    %392 = vmatmul.f32.gmra.mxu0 %v283
    %v393 = vpop.f32.mrf.mxu0
    %v394 = vadd.f32 %v374, %v393
    %395 = vdwg.mxu0
    %396 = vmatpush.msra.mxu0 %v316
    %397 = vmatpush.msra.mxu0 %v314
    %398 = vmatpush.msra.mxu0 %v312
    %399 = vmatpush.msra.mxu0 %v310
    %400 = vmatpush.msra.mxu0 %v308
    %401 = vmatpush.msra.mxu0 %v306
    %402 = vmatpush.msra.mxu0 %v304
    %403 = vmatpush.msra.mxu0 %v302
    %404 = vmatpush.msra.mxu0 %v300
    %405 = vmatpush.msra.mxu0 %v298
    %406 = vmatpush.msra.mxu0 %v296
    %407 = vmatpush.msra.mxu0 %v294
    %408 = vmatpush.msra.mxu0 %v292
    %409 = vmatpush.msra.mxu0 %v290
    %410 = vmatpush.msra.mxu0 %v288
    %411 = vmatpush.msra.mxu0 %v286
    %412 = vmatmul.f32.gmra.mxu0 %v282
    %v413 = vpop.f32.mrf.mxu0
    %v414 = vadd.f32 %v353, %v413
    %415 = vdwg.mxu0
    %416 = vmatpush.msra.mxu0 %v348
    %417 = vmatpush.msra.mxu0 %v346
    %418 = vmatpush.msra.mxu0 %v344
    %419 = vmatpush.msra.mxu0 %v342
    %420 = vmatpush.msra.mxu0 %v340
    %421 = vmatpush.msra.mxu0 %v338
    %422 = vmatpush.msra.mxu0 %v336
    %423 = vmatpush.msra.mxu0 %v334
    %424 = vmatpush.msra.mxu0 %v332
    %425 = vmatpush.msra.mxu0 %v330
    %426 = vmatpush.msra.mxu0 %v328
    %427 = vmatpush.msra.mxu0 %v326
    %428 = vmatpush.msra.mxu0 %v324
    %429 = vmatpush.msra.mxu0 %v322
    %430 = vmatpush.msra.mxu0 %v320
    %431 = vmatpush.msra.mxu0 %v318
    %432 = vmatmul.f32.gmra.mxu0 %v283
    %v433 = vpop.f32.mrf.mxu0
    %v434 = vadd.f32 %v414, %v433
    %435 = vdwg.mxu0
    %v436 = vrot.slane %v394, 4
    %v437 = vadd.f32 %v394, %v436
    %v438 = vrot.slane %v437, 2
    %v439 = vadd.f32 %v437, %v438
    %v440 = vrot.slane %v439, 1
    %v441 = vadd.f32 %v439, %v440
    %v442 = vrot.slane %v434, 4
    %v443 = vadd.f32 %v434, %v442
    %v444 = vrot.slane %v443, 2
    %v445 = vadd.f32 %v443, %v444
    %v446 = vrot.slane %v445, 1
    %v447 = vadd.f32 %v445, %v446
    %v448 = vrcp.pop 8.0
    %v449 = vmul.f32 8.0, %v448
    %v450 = vsub.f32 1.0, %v449
    %v451 = vmul.f32 %v448, %v450
    %v452 = vadd.f32 %v448, %v451
    %vm453 = vweird.f32 %v448
    %v454 = vsel %vm453, %v448, %v452
    %v455 = vmul.f32 %v441, %v454
    %v456 = vmul.f32 %v447, %v454
    %s457 = sld [smem:[#allocation2]]
    %v458 = vstv %s457
    %v459 = vmul.f32 %v455, %v458
    %s460 = ssub.f32 1.0, %s457
    %v461 = vstv %s460
    %v462 = vmul.f32 %v456, %v461
    %v463 = vadd.f32 %v459, %v462
    %v464 = vld [vmem:[#allocation7 + $0x10] sm:$0xff]
    %v465 = vld [vmem:[#allocation7 + $0x18] sm:$0xff]
    %v466 = vld [vmem:[#allocation7 + $0x20] sm:$0xff]
    %v467 = vld [vmem:[#allocation7 + $0x28] sm:$0xff]
    %v468 = vld [vmem:[#allocation7 + $0x30] sm:$0xff]
    %v469 = vld [vmem:[#allocation7 + $0x38] sm:$0xff]
    %v470 = vld [vmem:[#allocation7 + $0x40] sm:$0xff]
    %v471 = vld [vmem:[#allocation7 + $0x48] sm:$0xff]
    %v472 = vld [vmem:[#allocation7 + $0x50] sm:$0xff]
    %v473 = vld [vmem:[#allocation7 + $0x58] sm:$0xff]
    %v474 = vld [vmem:[#allocation7 + $0x60] sm:$0xff]
    %v475 = vld [vmem:[#allocation7 + $0x68] sm:$0xff]
    %v476 = vld [vmem:[#allocation7 + $0x70] sm:$0xff]
    %v477 = vld [vmem:[#allocation7 + $0x78] sm:$0xff]
    %v478 = vld [vmem:[#allocation7 + $0x80] sm:$0xff]
    %v479 = vld [vmem:[#allocation7 + $0x88] sm:$0xff]
    %v480 = vld [vmem:[#allocation7 + $0x90] sm:$0xff]
    %v481 = vld [vmem:[#allocation7 + $0x98] sm:$0xff]
    %v482 = vld [vmem:[#allocation7 + $0xa0] sm:$0xff]
    %v483 = vld [vmem:[#allocation7 + $0xa8] sm:$0xff]
    %v484 = vld [vmem:[#allocation7 + $0xb0] sm:$0xff]
    %v485 = vld [vmem:[#allocation7 + $0xb8] sm:$0xff]
    %v486 = vld [vmem:[#allocation7 + $0xc0] sm:$0xff]
    %v487 = vld [vmem:[#allocation7 + $0xc8] sm:$0xff]
    %v488 = vld [vmem:[#allocation7 + $0xd0] sm:$0xff]
    %v489 = vld [vmem:[#allocation7 + $0xd8] sm:$0xff]
    %v490 = vld [vmem:[#allocation7 + $0xe0] sm:$0xff]
    %v491 = vld [vmem:[#allocation7 + $0xe8] sm:$0xff]
    %v492 = vld [vmem:[#allocation7 + $0xf0] sm:$0xff]
    %v493 = vld [vmem:[#allocation7 + $0xf8] sm:$0xff]
    %v494 = vld [vmem:[#allocation7 + $0x100] sm:$0xff]
    %v495 = vld [vmem:[#allocation7 + $0x108] sm:$0xff]
    %496 = vmatpush.msra.mxu0 %v494
    %497 = vmatpush.msra.mxu0 %v492
    %498 = vmatpush.msra.mxu0 %v490
    %499 = vmatpush.msra.mxu0 %v488
    %500 = vmatpush.msra.mxu0 %v486
    %501 = vmatpush.msra.mxu0 %v484
    %502 = vmatpush.msra.mxu0 %v482
    %503 = vmatpush.msra.mxu0 %v480
    %504 = vmatpush.msra.mxu0 %v478
    %505 = vmatpush.msra.mxu0 %v476
    %506 = vmatpush.msra.mxu0 %v474
    %507 = vmatpush.msra.mxu0 %v472
    %508 = vmatpush.msra.mxu0 %v470
    %509 = vmatpush.msra.mxu0 %v468
    %510 = vmatpush.msra.mxu0 %v466
    %511 = vmatpush.msra.mxu0 %v464
    %512 = vmatmul.f32.gmra.mxu0 %v463
    %v513 = vpop.f32.mrf.mxu0
    %v514 = vadd.f32 0.0, %v513
    %515 = vdwg.mxu0
    %516 = vmatpush.msra.mxu0 %v495
    %517 = vmatpush.msra.mxu0 %v493
    %518 = vmatpush.msra.mxu0 %v491
    %519 = vmatpush.msra.mxu0 %v489
    %520 = vmatpush.msra.mxu0 %v487
    %521 = vmatpush.msra.mxu0 %v485
    %522 = vmatpush.msra.mxu0 %v483
    %523 = vmatpush.msra.mxu0 %v481
    %524 = vmatpush.msra.mxu0 %v479
    %525 = vmatpush.msra.mxu0 %v477
    %526 = vmatpush.msra.mxu0 %v475
    %527 = vmatpush.msra.mxu0 %v473
    %528 = vmatpush.msra.mxu0 %v471
    %529 = vmatpush.msra.mxu0 %v469
    %530 = vmatpush.msra.mxu0 %v467
    %531 = vmatpush.msra.mxu0 %v465
    %532 = vmatmul.f32.gmra.mxu0 %v463
    %v533 = vpop.f32.mrf.mxu0
    %v534 = vadd.f32 0.0, %v533
    %535 = vdwg.mxu0
    %v536 = vld [vmem:[%s2] sm:$0xff]
    %v537 = vld [vmem:[%s2 + $0x8] sm:$0xff]
    %s538 = scalar_lea.vmem [#allocation7], 272
    %v539 = vld [vmem:[%s538] ss:$8 sm:$0x3]
    %541 = vset.pattern.permute.xlu0 0
    %542 = vperm.xlu0 %541, %v536
    %v543 = vpop.permute.xlu0 %542
    %546 = vset.pattern.permute.xlu0 0
    %547 = vperm.xlu0 %546, %v537
    %v548 = vpop.permute.xlu0 %547
    %v551 = vperm.slane %v539, 0
    %v552 = vperm.slane %v539, 1
    %v555 = vmul.f32 %v543, %v551
    %v556 = vmul.f32 %v543, %v552
    %v557 = vmul.f32 %v548, %v551
    %v558 = vmul.f32 %v548, %v552
    %v559 = vperm.slane %v514, 0
    %v560 = vperm.slane %v534, 0
    %v561 = vadd.f32 %v559, %v555
    %v562 = vadd.f32 %v560, %v556
    %v563 = vadd.f32 %v559, %v557
    %v564 = vadd.f32 %v560, %v558
    %s565 = scalar_lea.vmem %s5, 3
    %v566 = vld [vmem:[%s565] ss:$8 sm:$0x3]
    %v568 = vperm.slane %v566, 0
    %v569 = vperm.slane %v566, 1
    %v572 = vadd.f32 %v561, %v568
    %v573 = vadd.f32 %v562, %v569
    %v574 = vadd.f32 %v563, %v568
    %v575 = vadd.f32 %v564, %v569
    %v576 = vmax.f32 %v572, 0.0
    %v577 = vmax.f32 %v573, 0.0
    %v578 = vmax.f32 %v574, 0.0
    %v579 = vmax.f32 %v575, 0.0
    %s580 = scalar_lea.vmem [#allocation5], 1024
    %v581 = vld [vmem:[%s580] sm:$0xff]
    %v582 = vld [vmem:[%s580 + $0x8] sm:$0xff]
    %v583 = vld [vmem:[%s580 + $0x10] sm:$0xff]
    %v584 = vld [vmem:[%s580 + $0x18] sm:$0xff]
    %v585 = vld [vmem:[%s580 + $0x20] sm:$0xff]
    %v586 = vld [vmem:[%s580 + $0x28] sm:$0xff]
    %v587 = vld [vmem:[%s580 + $0x30] sm:$0xff]
    %v588 = vld [vmem:[%s580 + $0x38] sm:$0xff]
    %v589 = vld [vmem:[%s580 + $0x40] sm:$0xff]
    %v590 = vld [vmem:[%s580 + $0x48] sm:$0xff]
    %v591 = vld [vmem:[%s580 + $0x50] sm:$0xff]
    %v592 = vld [vmem:[%s580 + $0x58] sm:$0xff]
    %v593 = vld [vmem:[%s580 + $0x60] sm:$0xff]
    %v594 = vld [vmem:[%s580 + $0x68] sm:$0xff]
    %v595 = vld [vmem:[%s580 + $0x70] sm:$0xff]
    %v596 = vld [vmem:[%s580 + $0x78] sm:$0xff]
    %v597 = vld [vmem:[%s580 + $0x80] sm:$0xff]
    %v598 = vld [vmem:[%s580 + $0x88] sm:$0xff]
    %v599 = vld [vmem:[%s580 + $0x90] sm:$0xff]
    %v600 = vld [vmem:[%s580 + $0x98] sm:$0xff]
    %v601 = vld [vmem:[%s580 + $0xa0] sm:$0xff]
    %v602 = vld [vmem:[%s580 + $0xa8] sm:$0xff]
    %v603 = vld [vmem:[%s580 + $0xb0] sm:$0xff]
    %v604 = vld [vmem:[%s580 + $0xb8] sm:$0xff]
    %v605 = vld [vmem:[%s580 + $0xc0] sm:$0xff]
    %v606 = vld [vmem:[%s580 + $0xc8] sm:$0xff]
    %v607 = vld [vmem:[%s580 + $0xd0] sm:$0xff]
    %v608 = vld [vmem:[%s580 + $0xd8] sm:$0xff]
    %v609 = vld [vmem:[%s580 + $0xe0] sm:$0xff]
    %v610 = vld [vmem:[%s580 + $0xe8] sm:$0xff]
    %v611 = vld [vmem:[%s580 + $0xf0] sm:$0xff]
    %v612 = vld [vmem:[%s580 + $0xf8] sm:$0xff]
    %v613 = vld [vmem:[%s580 + $0x100] sm:$0xff]
    %v614 = vld [vmem:[%s580 + $0x108] sm:$0xff]
    %v615 = vld [vmem:[%s580 + $0x110] sm:$0xff]
    %v616 = vld [vmem:[%s580 + $0x118] sm:$0xff]
    %v617 = vld [vmem:[%s580 + $0x120] sm:$0xff]
    %v618 = vld [vmem:[%s580 + $0x128] sm:$0xff]
    %v619 = vld [vmem:[%s580 + $0x130] sm:$0xff]
    %v620 = vld [vmem:[%s580 + $0x138] sm:$0xff]
    %v621 = vld [vmem:[%s580 + $0x140] sm:$0xff]
    %v622 = vld [vmem:[%s580 + $0x148] sm:$0xff]
    %v623 = vld [vmem:[%s580 + $0x150] sm:$0xff]
    %v624 = vld [vmem:[%s580 + $0x158] sm:$0xff]
    %v625 = vld [vmem:[%s580 + $0x160] sm:$0xff]
    %v626 = vld [vmem:[%s580 + $0x168] sm:$0xff]
    %v627 = vld [vmem:[%s580 + $0x170] sm:$0xff]
    %v628 = vld [vmem:[%s580 + $0x178] sm:$0xff]
    %v629 = vld [vmem:[%s580 + $0x180] sm:$0xff]
    %v630 = vld [vmem:[%s580 + $0x188] sm:$0xff]
    %v631 = vld [vmem:[%s580 + $0x190] sm:$0xff]
    %v632 = vld [vmem:[%s580 + $0x198] sm:$0xff]
    %v633 = vld [vmem:[%s580 + $0x1a0] sm:$0xff]
    %v634 = vld [vmem:[%s580 + $0x1a8] sm:$0xff]
    %v635 = vld [vmem:[%s580 + $0x1b0] sm:$0xff]
    %v636 = vld [vmem:[%s580 + $0x1b8] sm:$0xff]
    %v637 = vld [vmem:[%s580 + $0x1c0] sm:$0xff]
    %v638 = vld [vmem:[%s580 + $0x1c8] sm:$0xff]
    %v639 = vld [vmem:[%s580 + $0x1d0] sm:$0xff]
    %v640 = vld [vmem:[%s580 + $0x1d8] sm:$0xff]
    %v641 = vld [vmem:[%s580 + $0x1e0] sm:$0xff]
    %v642 = vld [vmem:[%s580 + $0x1e8] sm:$0xff]
    %v643 = vld [vmem:[%s580 + $0x1f0] sm:$0xff]
    %v644 = vld [vmem:[%s580 + $0x1f8] sm:$0xff]
    %s645 = scalar_lea.vmem %s5, 4
    %v646 = vld [vmem:[%s645] ss:$8 sm:$0x3]
    %v648 = vperm.slane %v646, 0
    %v649 = vperm.slane %v646, 1
    %652 = vmatpush.msra.mxu0 %v611
    %653 = vmatpush.msra.mxu0 %v609
    %654 = vmatpush.msra.mxu0 %v607
    %655 = vmatpush.msra.mxu0 %v605
    %656 = vmatpush.msra.mxu0 %v603
    %657 = vmatpush.msra.mxu0 %v601
    %658 = vmatpush.msra.mxu0 %v599
    %659 = vmatpush.msra.mxu0 %v597
    %660 = vmatpush.msra.mxu0 %v595
    %661 = vmatpush.msra.mxu0 %v593
    %662 = vmatpush.msra.mxu0 %v591
    %663 = vmatpush.msra.mxu0 %v589
    %664 = vmatpush.msra.mxu0 %v587
    %665 = vmatpush.msra.mxu0 %v585
    %666 = vmatpush.msra.mxu0 %v583
    %667 = vmatpush.msra.mxu0 %v581
    %668 = vmatmul.f32.gmra.mxu0 %v576
    %v669 = vpop.f32.mrf.mxu0
    %v670 = vadd.f32 %v648, %v669
    %671 = vmatmul.f32.gmra.mxu0 %v578
    %v672 = vpop.f32.mrf.mxu0
    %v673 = vadd.f32 %v648, %v672
    %674 = vdwg.mxu0
    %675 = vmatpush.msra.mxu0 %v643
    %676 = vmatpush.msra.mxu0 %v641
    %677 = vmatpush.msra.mxu0 %v639
    %678 = vmatpush.msra.mxu0 %v637
    %679 = vmatpush.msra.mxu0 %v635
    %680 = vmatpush.msra.mxu0 %v633
    %681 = vmatpush.msra.mxu0 %v631
    %682 = vmatpush.msra.mxu0 %v629
    %683 = vmatpush.msra.mxu0 %v627
    %684 = vmatpush.msra.mxu0 %v625
    %685 = vmatpush.msra.mxu0 %v623
    %686 = vmatpush.msra.mxu0 %v621
    %687 = vmatpush.msra.mxu0 %v619
    %688 = vmatpush.msra.mxu0 %v617
    %689 = vmatpush.msra.mxu0 %v615
    %690 = vmatpush.msra.mxu0 %v613
    %691 = vmatmul.f32.gmra.mxu0 %v577
    %v692 = vpop.f32.mrf.mxu0
    %v693 = vadd.f32 %v670, %v692
    %694 = vmatmul.f32.gmra.mxu0 %v579
    %v695 = vpop.f32.mrf.mxu0
    %v696 = vadd.f32 %v673, %v695
    %697 = vdwg.mxu0
    %698 = vmatpush.msra.mxu0 %v612
    %699 = vmatpush.msra.mxu0 %v610
    %700 = vmatpush.msra.mxu0 %v608
    %701 = vmatpush.msra.mxu0 %v606
    %702 = vmatpush.msra.mxu0 %v604
    %703 = vmatpush.msra.mxu0 %v602
    %704 = vmatpush.msra.mxu0 %v600
    %705 = vmatpush.msra.mxu0 %v598
    %706 = vmatpush.msra.mxu0 %v596
    %707 = vmatpush.msra.mxu0 %v594
    %708 = vmatpush.msra.mxu0 %v592
    %709 = vmatpush.msra.mxu0 %v590
    %710 = vmatpush.msra.mxu0 %v588
    %711 = vmatpush.msra.mxu0 %v586
    %712 = vmatpush.msra.mxu0 %v584
    %713 = vmatpush.msra.mxu0 %v582
    %714 = vmatmul.f32.gmra.mxu0 %v576
    %v715 = vpop.f32.mrf.mxu0
    %v716 = vadd.f32 %v649, %v715
    %717 = vmatmul.f32.gmra.mxu0 %v578
    %v718 = vpop.f32.mrf.mxu0
    %v719 = vadd.f32 %v649, %v718
    %720 = vdwg.mxu0
    %721 = vmatpush.msra.mxu0 %v644
    %722 = vmatpush.msra.mxu0 %v642
    %723 = vmatpush.msra.mxu0 %v640
    %724 = vmatpush.msra.mxu0 %v638
    %725 = vmatpush.msra.mxu0 %v636
    %726 = vmatpush.msra.mxu0 %v634
    %727 = vmatpush.msra.mxu0 %v632
    %728 = vmatpush.msra.mxu0 %v630
    %729 = vmatpush.msra.mxu0 %v628
    %730 = vmatpush.msra.mxu0 %v626
    %731 = vmatpush.msra.mxu0 %v624
    %732 = vmatpush.msra.mxu0 %v622
    %733 = vmatpush.msra.mxu0 %v620
    %734 = vmatpush.msra.mxu0 %v618
    %735 = vmatpush.msra.mxu0 %v616
    %736 = vmatpush.msra.mxu0 %v614
    %737 = vmatmul.f32.gmra.mxu0 %v577
    %v738 = vpop.f32.mrf.mxu0
    %v739 = vadd.f32 %v716, %v738
    %740 = vmatmul.f32.gmra.mxu0 %v579
    %v741 = vpop.f32.mrf.mxu0
    %v742 = vadd.f32 %v719, %v741
    %743 = vdwg.mxu0
    %v744 = vmax.f32 %v693, 0.0
    %v745 = vmax.f32 %v739, 0.0
    %v746 = vmax.f32 %v696, 0.0
    %v747 = vmax.f32 %v742, 0.0
    %s748 = scalar_lea.vmem [#allocation5], 1536
    %v749 = vld [vmem:[%s748] sm:$0xff]
    %v750 = vld [vmem:[%s748 + $0x10] sm:$0xff]
    %v751 = vld [vmem:[%s748 + $0x20] sm:$0xff]
    %v752 = vld [vmem:[%s748 + $0x30] sm:$0xff]
    %v753 = vld [vmem:[%s748 + $0x40] sm:$0xff]
    %v754 = vld [vmem:[%s748 + $0x50] sm:$0xff]
    %v755 = vld [vmem:[%s748 + $0x60] sm:$0xff]
    %v756 = vld [vmem:[%s748 + $0x70] sm:$0xff]
    %v757 = vld [vmem:[%s748 + $0x80] sm:$0xff]
    %v758 = vld [vmem:[%s748 + $0x90] sm:$0xff]
    %v759 = vld [vmem:[%s748 + $0xa0] sm:$0xff]
    %v760 = vld [vmem:[%s748 + $0xb0] sm:$0xff]
    %v761 = vld [vmem:[%s748 + $0xc0] sm:$0xff]
    %v762 = vld [vmem:[%s748 + $0xd0] sm:$0xff]
    %v763 = vld [vmem:[%s748 + $0xe0] sm:$0xff]
    %v764 = vld [vmem:[%s748 + $0xf0] sm:$0xff]
    %v765 = vld [vmem:[%s748 + $0x100] sm:$0xff]
    %v766 = vld [vmem:[%s748 + $0x110] sm:$0xff]
    %v767 = vld [vmem:[%s748 + $0x120] sm:$0xff]
    %v768 = vld [vmem:[%s748 + $0x130] sm:$0xff]
    %v769 = vld [vmem:[%s748 + $0x140] sm:$0xff]
    %v770 = vld [vmem:[%s748 + $0x150] sm:$0xff]
    %v771 = vld [vmem:[%s748 + $0x160] sm:$0xff]
    %v772 = vld [vmem:[%s748 + $0x170] sm:$0xff]
    %v773 = vld [vmem:[%s748 + $0x180] sm:$0xff]
    %v774 = vld [vmem:[%s748 + $0x190] sm:$0xff]
    %v775 = vld [vmem:[%s748 + $0x1a0] sm:$0xff]
    %v776 = vld [vmem:[%s748 + $0x1b0] sm:$0xff]
    %v777 = vld [vmem:[%s748 + $0x1c0] sm:$0xff]
    %v778 = vld [vmem:[%s748 + $0x1d0] sm:$0xff]
    %v779 = vld [vmem:[%s748 + $0x1e0] sm:$0xff]
    %v780 = vld [vmem:[%s748 + $0x1f0] sm:$0xff]
    %s781 = scalar_lea.vmem %s5, 5
    %v782 = vld [vmem:[%s781] ss:$8 sm:$0x3]
    %v784 = vperm.slane %v782, 0
    %786 = vmatpush.msra.mxu0 %v764
    %787 = vmatpush.msra.mxu0 %v763
    %788 = vmatpush.msra.mxu0 %v762
    %789 = vmatpush.msra.mxu0 %v761
    %790 = vmatpush.msra.mxu0 %v760
    %791 = vmatpush.msra.mxu0 %v759
    %792 = vmatpush.msra.mxu0 %v758
    %793 = vmatpush.msra.mxu0 %v757
    %794 = vmatpush.msra.mxu0 %v756
    %795 = vmatpush.msra.mxu0 %v755
    %796 = vmatpush.msra.mxu0 %v754
    %797 = vmatpush.msra.mxu0 %v753
    %798 = vmatpush.msra.mxu0 %v752
    %799 = vmatpush.msra.mxu0 %v751
    %800 = vmatpush.msra.mxu0 %v750
    %801 = vmatpush.msra.mxu0 %v749
    %802 = vmatmul.f32.gmra.mxu0 %v744
    %v803 = vpop.f32.mrf.mxu0
    %v804 = vadd.f32 %v784, %v803
    %805 = vmatmul.f32.gmra.mxu0 %v746
    %v806 = vpop.f32.mrf.mxu0
    %v807 = vadd.f32 %v784, %v806
    %808 = vdwg.mxu0
    %809 = vmatpush.msra.mxu0 %v780
    %810 = vmatpush.msra.mxu0 %v779
    %811 = vmatpush.msra.mxu0 %v778
    %812 = vmatpush.msra.mxu0 %v777
    %813 = vmatpush.msra.mxu0 %v776
    %814 = vmatpush.msra.mxu0 %v775
    %815 = vmatpush.msra.mxu0 %v774
    %816 = vmatpush.msra.mxu0 %v773
    %817 = vmatpush.msra.mxu0 %v772
    %818 = vmatpush.msra.mxu0 %v771
    %819 = vmatpush.msra.mxu0 %v770
    %820 = vmatpush.msra.mxu0 %v769
    %821 = vmatpush.msra.mxu0 %v768
    %822 = vmatpush.msra.mxu0 %v767
    %823 = vmatpush.msra.mxu0 %v766
    %824 = vmatpush.msra.mxu0 %v765
    %825 = vmatmul.f32.gmra.mxu0 %v745
    %v826 = vpop.f32.mrf.mxu0
    %v827 = vadd.f32 %v804, %v826
    %828 = vmatmul.f32.gmra.mxu0 %v747
    %v829 = vpop.f32.mrf.mxu0
    %v830 = vadd.f32 %v807, %v829
    %831 = vdwg.mxu0
    %vm832 = vcmask 64512
    %833 = vst.msk [vmem:[%s6] sm:$0xff] %vm832, %v827
    %834 = vst.msk [vmem:[%s6 + $0x8] sm:$0xff] %vm832, %v830
    // Predicated region
    $region38: #{tpu_custom_call.1} parent=1 // pred_check
      _
    $region39: #{tpu_custom_call.1} parent=1 // pred_check_branch
      %836 = sbr.rel (0) target = $region41
    $region40: #{tpu_custom_call.1} parent=1 // pred_region
      _
    $region41: #{tpu_custom_call.1} parent=1 // pred_fallthru
      _
    // Predicated region
    $region42: #{tpu_custom_call.1} parent=1 // pred_check
      _
    $region43: #{tpu_custom_call.1} parent=1 // pred_check_branch
      %838 = sbr.rel (0) target = $region45
    $region44: #{tpu_custom_call.1} parent=1 // pred_region
      _
    $region45: #{tpu_custom_call.1} parent=1 // pred_fallthru
      _
    %839 = vsyncpa [#allocation4], 1
    %840 = vsyncpa [#allocation6], 1

</llo_original>
